<compile_context>
chip_gen: v7x
topology: tpu7x:2x2x1
jax: 0.10.0
libtpu: 0.0.40
codegen_flags: <defaults>
</compile_context>

<pallas_src>
import functools

import jax
import jax.numpy as jnp
from jax.experimental import pallas as pl
from jax.experimental.pallas import tpu as pltpu


_VMEM_CAP_BYTES = 48 * 1024 * 1024        # safe under v7x's 64 MiB physical per-TC VMEM
_VMEM_FLOOR_BYTES = 32 * 1024 * 1024      # never request less than the default scoped limit
_VMEM_HEADROOM_BYTES = 4 * 1024 * 1024    # Mosaic internal scratch / semaphores


def _round_up(x, m):
    return ((x + m - 1) // m) * m


def _transform_kernel(x_ref, w_ref, p_ref, out_ref, *, eps):
    """One M-tile: dense (MXU, f32 accumulate) -> relu -> LayerNorm over H."""
    # Dense: (tm, H) @ (H, H) -> (tm, H); MXU in input dtype, f32 accumulation.
    h = jnp.dot(x_ref[...], w_ref[...], preferred_element_type=jnp.float32)
    h = h + p_ref[0:1, :].astype(jnp.float32)            # bias (row 0 of slab)

    # Activation (MobileBERT hidden_act default = "relu").
    h = jnp.maximum(h, 0.0)

    # LayerNorm over the hidden (lane) dim, f32 math.
    mu = jnp.mean(h, axis=-1, keepdims=True)
    diff = h - mu
    var = jnp.mean(diff * diff, axis=-1, keepdims=True)
    h_hat = diff * jax.lax.rsqrt(var + eps)
    y = (h_hat * p_ref[1:2, :].astype(jnp.float32)        # gamma (row 1)
         + p_ref[2:3, :].astype(jnp.float32))             # beta  (row 2)

    out_ref[...] = y.astype(out_ref.dtype)


def prepare_head_params(params):
    """One-time parameter prep: pre-transpose W, pack b/gamma/beta into one (8, H) slab."""
    w = params["w_dense"]                 # (out, in) as in nn.Linear
    H = w.shape[0]
    pdtype = w.dtype
    slab = jnp.zeros((8, H), dtype=pdtype)            # one sublane tile; rows 0..2 used
    slab = slab.at[0, :].set(params["b_dense"].astype(pdtype))
    slab = slab.at[1, :].set(params["ln_gamma"].astype(pdtype))
    slab = slab.at[2, :].set(params["ln_beta"].astype(pdtype))
    return {"w_t": w.T, "param_slab": slab}           # w_t: (in, out) so kernel does x @ W


def mobile_bert_prediction_head_transform(hidden_states, prepared_params, *,
                                          eps=1e-12, row_tile=1024):
    """hidden_states: (B, S, H).  Returns (B, S, H) transformed hidden states."""
    B, S, H = hidden_states.shape
    M = B * S
    x2d = hidden_states.reshape(M, H)

    w_t = prepared_params["w_t"]
    slab = prepared_params["param_slab"]

    x_isz = jnp.dtype(hidden_states.dtype).itemsize
    p_isz = jnp.dtype(w_t.dtype).itemsize
    o_isz = x_isz

    # Sublane alignment for the M tile: 8 rows for f32, 16 for bf16 (sublane packing).
    align = max(8, 32 // x_isz)

    tm = min(_round_up(row_tile, align), _round_up(M, align))

    # v7x megacore: keep >= 2 grid steps when M allows so the "parallel" M axis
    # can actually shard across both TensorCores (harmless on v5e/v6e).
    if pl.cdiv(M, tm) < 2 and M >= 2 * align:
        tm = _round_up(pl.cdiv(M, 2), align)

    # Size the tile against a VMEM budget that is safe on every generation.
    def pipeline_bytes(t):
        return (2 * t * H * x_isz          # double-buffered input tile
                + 2 * t * H * o_isz        # double-buffered output tile
                + 2 * H * H * p_isz        # resident weight (2 buffers by default)
                + 2 * 8 * H * p_isz)       # packed bias/gamma/beta slab

    while tm > align and pipeline_bytes(tm) + _VMEM_HEADROOM_BYTES > _VMEM_CAP_BYTES:
        tm = max(align, _round_up(tm // 2, align))

    # No wrapper-side padding: Pallas masks the partial trailing M block.
    grid = (pl.cdiv(M, tm),)
    vmem_limit = min(_VMEM_CAP_BYTES,
                     max(_VMEM_FLOOR_BYTES, pipeline_bytes(tm) + _VMEM_HEADROOM_BYTES))

    kernel = functools.partial(_transform_kernel, eps=eps)

    out2d = pl.pallas_call(
        kernel,
        out_shape=jax.ShapeDtypeStruct((M, H), hidden_states.dtype),
        grid_spec=pltpu.PrefetchScalarGridSpec(
            num_scalar_prefetch=0,
            grid=grid,
            in_specs=[
                pl.BlockSpec((tm, H), lambda i: (i, 0)),   # x tile, streamed over M
                pl.BlockSpec((H, H), lambda i: (0, 0)),    # W^T, constant across grid
                pl.BlockSpec((8, H), lambda i: (0, 0)),    # packed b / gamma / beta
            ],
            out_specs=pl.BlockSpec((tm, H), lambda i: (i, 0)),  # lane-dense (tm, H) store
        ),
        compiler_params=pltpu.CompilerParams(
            dimension_semantics=("parallel",),             # independent M tiles
            vmem_limit_bytes=int(vmem_limit),
        ),
    )(x2d, w_t, slab)

    return out2d.reshape(B, S, H)


def _reference(hidden_states, params, eps=1e-12):
    """Pure-JAX reference mirroring the PyTorch forward."""
    h = jnp.einsum("bsh,oh->bso", hidden_states, params["w_dense"]) + params["b_dense"]
    h = jnp.maximum(h, 0.0)
    mu = jnp.mean(h, axis=-1, keepdims=True)
    var = jnp.mean((h - mu) ** 2, axis=-1, keepdims=True)
    h = (h - mu) / jnp.sqrt(var + eps)
    return h * params["ln_gamma"] + params["ln_beta"]


if __name__ == "__main__":
    # Small config consistent with the module: batch=2, seq=8, hidden=128.
    H = 128
    eps = 1e-12

    key = jax.random.PRNGKey(0)
    k0, k1, k2, k3, k4, k5 = jax.random.split(key, 6)

    params = {
        # nn.Linear(H, H): weight (out, in), bias (out,)
        "w_dense": jax.random.normal(k1, (H, H), dtype=jnp.float32) * 0.02,
        "b_dense": jax.random.normal(k2, (H,), dtype=jnp.float32) * 0.02,
        # LayerNorm(H, eps)
        "ln_gamma": jnp.ones((H,), dtype=jnp.float32)
                    + 0.1 * jax.random.normal(k3, (H,), dtype=jnp.float32),
        "ln_beta": 0.1 * jax.random.normal(k4, (H,), dtype=jnp.float32),
    }
    prepared = prepare_head_params(params)   # one-time: W^T + packed (8, H) slab

    # Case 1: B*S a multiple of the sublane alignment (2 full tiles).
    x1 = jax.random.normal(k0, (2, 8, H), dtype=jnp.float32)
    out1 = jax.block_until_ready(
        mobile_bert_prediction_head_transform(x1, prepared, eps=eps))
    ref1 = _reference(x1, params, eps=eps)
    assert out1.shape == x1.shape, out1.shape
    assert jnp.allclose(out1, ref1, atol=1e-4, rtol=1e-4), \
        float(jnp.max(jnp.abs(out1 - ref1)))

    # Case 2: B*S NOT a multiple of the tile -> exercises the masked partial tail block
    # (replaces the old wrapper-side pad + slice).
    x2 = jax.random.normal(k5, (2, 7, H), dtype=jnp.float32)
    out2 = jax.block_until_ready(
        mobile_bert_prediction_head_transform(x2, prepared, eps=eps))
    ref2 = _reference(x2, params, eps=eps)
    assert out2.shape == x2.shape, out2.shape
    assert jnp.allclose(out2, ref2, atol=1e-4, rtol=1e-4), \
        float(jnp.max(jnp.abs(out2 - ref2)))

    print("KERNEL_OK")
</pallas_src>

<mosaic_0001>
module attributes {stable_mosaic.version = 11 : i64} {
  func.func @_transform_kernel(%arg0: i32, %arg1: memref<8x128xf32, #tpu.memory_space<vmem>>, %arg2: memref<128x128xf32, #tpu.memory_space<vmem>>, %arg3: memref<8x128xf32, #tpu.memory_space<vmem>>, %arg4: memref<8x128xf32, #tpu.memory_space<vmem>>) attributes {dimension_semantics = [#tpu.dimension_semantics<parallel>], iteration_bounds = array<i64: 2>, scalar_prefetch = 0 : i64, scratch_operands = 0 : i64, tpu.core_type = #tpu.core_type<tc>, window_params = [{transform_indices = @transform_0, window_bounds = array<i64: 8, 128>}, {pipeline_mode = #tpu.pipeline_mode<synchronous>, transform_indices = @transform_1, window_bounds = array<i64: 128, 128>}, {pipeline_mode = #tpu.pipeline_mode<synchronous>, transform_indices = @transform_2, window_bounds = array<i64: 8, 128>}, {transform_indices = @transform_3, window_bounds = array<i64: 8, 128>}]} {
    %c0 = arith.constant 0 : index
    %c0_0 = arith.constant 0 : index
    %0 = vector.load %arg1[%c0, %c0_0] : memref<8x128xf32, #tpu.memory_space<vmem>>, vector<8x128xf32>
    %c0_1 = arith.constant 0 : index
    %c0_2 = arith.constant 0 : index
    %1 = vector.load %arg2[%c0_1, %c0_2] : memref<128x128xf32, #tpu.memory_space<vmem>>, vector<128x128xf32>
    %cst = arith.constant dense<0.000000e+00> : vector<8x128xf32>
    %2 = tpu.matmul %0, %1, %cst {dimension_numbers = #tpu.dot_dimension_numbers<[1], [0], [0], [1], [0, 0, 1, 1], [], []>} : vector<8x128xf32>, vector<128x128xf32>, vector<8x128xf32> -> vector<8x128xf32>
    %c0_3 = arith.constant 0 : index
    %c0_4 = arith.constant 0 : index
    %3 = vector.load %arg3[%c0_3, %c0_4] : memref<8x128xf32, #tpu.memory_space<vmem>>, vector<1x128xf32>
    %4 = vector.broadcast %3 : vector<1x128xf32> to vector<8x128xf32>
    %5 = arith.addf %2, %4 : vector<8x128xf32>
    %cst_5 = arith.constant 0.000000e+00 : f32
    %6 = vector.broadcast %cst_5 : f32 to vector<8x128xf32>
    %7 = arith.maximumf %5, %6 : vector<8x128xf32>
    %cst_6 = arith.constant dense<0.000000e+00> : vector<8xf32>
    %8 = vector.multi_reduction <add>, %7, %cst_6 [1] : vector<8x128xf32> to vector<8xf32>
    %9 = vector.shape_cast %8 : vector<8xf32> to vector<8x1xf32>
    %cst_7 = arith.constant 1.280000e+02 : f32
    %10 = vector.broadcast %cst_7 : f32 to vector<8x1xf32>
    %11 = arith.divf %9, %10 : vector<8x1xf32>
    %12 = vector.broadcast %11 : vector<8x1xf32> to vector<8x128xf32>
    %13 = arith.subf %7, %12 : vector<8x128xf32>
    %14 = arith.mulf %13, %13 : vector<8x128xf32>
    %cst_8 = arith.constant dense<0.000000e+00> : vector<8xf32>
    %15 = vector.multi_reduction <add>, %14, %cst_8 [1] : vector<8x128xf32> to vector<8xf32>
    %16 = vector.shape_cast %15 : vector<8xf32> to vector<8x1xf32>
    %cst_9 = arith.constant 1.280000e+02 : f32
    %17 = vector.broadcast %cst_9 : f32 to vector<8x1xf32>
    %18 = arith.divf %16, %17 : vector<8x1xf32>
    %cst_10 = arith.constant 9.99999996E-13 : f32
    %19 = vector.broadcast %cst_10 : f32 to vector<8x1xf32>
    %20 = arith.addf %18, %19 : vector<8x1xf32>
    %21 = math.rsqrt %20 : vector<8x1xf32>
    %22 = vector.broadcast %21 : vector<8x1xf32> to vector<8x128xf32>
    %23 = arith.mulf %13, %22 : vector<8x128xf32>
    %c1 = arith.constant 1 : index
    %c0_11 = arith.constant 0 : index
    %24 = vector.load %arg3[%c1, %c0_11] : memref<8x128xf32, #tpu.memory_space<vmem>>, vector<1x128xf32>
    %25 = vector.broadcast %24 : vector<1x128xf32> to vector<8x128xf32>
    %26 = arith.mulf %23, %25 : vector<8x128xf32>
    %c2 = arith.constant 2 : index
    %c0_12 = arith.constant 0 : index
    %27 = vector.load %arg3[%c2, %c0_12] : memref<8x128xf32, #tpu.memory_space<vmem>>, vector<1x128xf32>
    %28 = vector.broadcast %27 : vector<1x128xf32> to vector<8x128xf32>
    %29 = arith.addf %26, %28 : vector<8x128xf32>
    %c0_13 = arith.constant 0 : index
    %c0_14 = arith.constant 0 : index
    %30 = vector.load %arg4[%c0_13, %c0_14] : memref<8x128xf32, #tpu.memory_space<vmem>>, vector<8x128xf32>
    tpu.vector_store %arg4[%c0_13, %c0_14], %29 {strides = array<i32>} : memref<8x128xf32, #tpu.memory_space<vmem>>, vector<8x128xf32>,
    return
  }
  func.func @transform_0(%arg0: i32) -> (i32, i32) {
    %c0_i32 = arith.constant 0 : i32
    %c0_i32_0 = arith.constant 0 : i32
    return %arg0, %c0_i32 : i32, i32
  }
  func.func @transform_1(%arg0: i32) -> (i32, i32) {
    %c0_i32 = arith.constant 0 : i32
    %c0_i32_0 = arith.constant 0 : i32
    %c0_i32_1 = arith.constant 0 : i32
    return %c0_i32, %c0_i32_0 : i32, i32
  }
  func.func @transform_2(%arg0: i32) -> (i32, i32) {
    %c0_i32 = arith.constant 0 : i32
    %c0_i32_0 = arith.constant 0 : i32
    %c0_i32_1 = arith.constant 0 : i32
    return %c0_i32, %c0_i32_0 : i32, i32
  }
  func.func @transform_3(%arg0: i32) -> (i32, i32) {
    %c0_i32 = arith.constant 0 : i32
    %c0_i32_0 = arith.constant 0 : i32
    return %arg0, %c0_i32 : i32, i32
  }
}

</mosaic_0001>

<llo_original>
// kernel: tpu_custom_call.1
$region0: #{tpu_custom_call.1}
  #allocation0 [shape = 'u32[]', space=smem, size = 0x4, offset = 0x4, fixed_abs, tag = 'smem constant byte address 0x4 - core index']
  #allocation1 [shape = 'u32[144,128]{1,0:T(1,128)}', space=vmem, size = 0x12000, scoped, tag = 'internal scratch']
  %s0 = inlined_call_operand.hbm [shape: f32[16,128], index: 0, kind: input, shape index: {}]
  %s1 = inlined_call_operand.hbm [shape: f32[128,128], index: 1, kind: input, shape index: {}]
  %s2 = inlined_call_operand.hbm [shape: f32[8,128], index: 2, kind: input, shape index: {}]
  %s3 = inlined_call_operand.hbm [shape: f32[16,128], index: 3, kind: output, shape index: {}]
  %s4 = sld [smem:[#allocation0]]
  $region57: #{tpu_custom_call.1} parent=0
    _
  %s6 = ssub.s32 1, %s4
  %s7 = scalar_select 0, %s6, %s4
  $region1: #{tpu_custom_call.1} parent=0
    #allocation2 [shape = 'u8[8192]{0}', space=vmem, size = 0x2000, scoped, tag = 'input window, operand 0']
    #allocation3 [shape = 's32[2]{0}', space=sflag, size = 0x8, scoped, tag = 'scoped memory for tpu_custom_call.1']
    #allocation4 [shape = 's32[2]{0}', space=sflag, size = 0x8, scoped, tag = 'scoped memory for tpu_custom_call.1']
    #allocation5 [shape = 'u8[65536]{0}', space=vmem, size = 0x10000, scoped, tag = 'input window, operand 1, single buffered']
    #allocation6 [shape = 's32[1]{0}', space=sflag, size = 0x4, scoped, tag = 'scoped memory for tpu_custom_call.1']
    #allocation7 [shape = 'u8[4096]{0}', space=vmem, size = 0x1000, scoped, tag = 'input window, operand 2, single buffered']
    #allocation8 [shape = 'u8[8192]{0}', space=vmem, size = 0x2000, scoped, tag = 'output window, operand 0']
    %8 = vsyncpa [#allocation3], 0
    %s9 = scalar_lea.sflag [#allocation3], 1
    %10 = vsyncpa %s9, 0
    %11 = vsyncpa [#allocation6], 0
    %12 = vsyncpa [#allocation4], 0
    %s13 = scalar_lea.sflag [#allocation4], 1
    %14 = vsyncpa %s13, 0
    loop: start=0, step=1, limit=4
    $region2: #{tpu_custom_call.1} parent=1 // loop_pre_header
      _
    $region3: #{tpu_custom_call.1} parent=1 // loop_header
      %s16 = sphi 0, %s20
      %p17 = scmp.ge.s32.totalorder %s16, 4
      %s26 = sphi 0, %s28
      %s29 = sphi 0, %s26
      %s30 = sphi 0, %s29
      %s46 = sphi 0, %s30
      %s50 = sphi 0, %s50
      %s52 = sphi 0, %s50
      %s53 = sphi 0, %s52
      %s67 = sphi 0, %s53
      %s71 = sphi 0, %s71
      %s73 = sphi 0, %s71
      %s74 = sphi 0, %s73
      %s88 = sphi 0, %s74
      %s94 = sphi 0, %s96
      %s97 = sphi 0, %s94
      %s98 = sphi 0, %s97
      %s114 = sphi 0, %s98
    $region4: #{tpu_custom_call.1} parent=1 // loop_header_branch
      %19 = sbr.rel (%p17) target = $region8
    $region5: #{tpu_custom_call.1} parent=1 // loop_body
      %s21 = ssub.s32 %s16, 1
      %s22 = ssub.s32 %s16, 2
      %s23 = sadd.s32 %s16, 1
      %s24 = ssub.s32 %s16, %s23
      %p25 = scmp.eq.s32.totalorder %s24, 0
      %s27 = sadd.s32 %s26, 1
      %s28 = scalar_select %p25, %s26, %s27
      %p31 = pneg %p25
      %p32 = scmp.eq.s32.totalorder %s16, 1
      %p33 = por %p31, %p32
      %p34 = scmp.ne.s32.totalorder %s26, %s29
      %p35 = scmp.eq.s32.totalorder %s16, 0
      %p36 = por %p34, %p35
      %p37 = scmp.ne.s32.totalorder %s26, %s29
      %p38 = scmp.eq.s32.totalorder %s21, 1
      %p39 = por %p37, %p38
      %p40 = scmp.ne.s32.totalorder %s29, %s30
      %p41 = scmp.eq.s32.totalorder %s21, 0
      %p42 = por %p40, %p41
      %p43 = scmp.ne.s32.totalorder %s29, %s30
      %p44 = scmp.eq.s32.totalorder %s22, 1
      %p45 = por %p43, %p44
      %p47 = scmp.ne.s32.totalorder %s30, %s46
      %p48 = scmp.eq.s32.totalorder %s22, 0
      %p49 = por %p47, %p48
      %s51 = sadd.s32 %s50, 1
      %p54 = scmp.eq.s32.totalorder %s16, 1
      %p55 = scmp.ne.s32.totalorder %s50, %s52
      %p56 = scmp.eq.s32.totalorder %s16, 0
      %p57 = por %p55, %p56
      %p58 = scmp.ne.s32.totalorder %s50, %s52
      %p59 = scmp.eq.s32.totalorder %s21, 1
      %p60 = por %p58, %p59
      %p61 = scmp.ne.s32.totalorder %s52, %s53
      %p62 = scmp.eq.s32.totalorder %s21, 0
      %p63 = por %p61, %p62
      %p64 = scmp.ne.s32.totalorder %s52, %s53
      %p65 = scmp.eq.s32.totalorder %s22, 1
      %p66 = por %p64, %p65
      %p68 = scmp.ne.s32.totalorder %s53, %s67
      %p69 = scmp.eq.s32.totalorder %s22, 0
      %p70 = por %p68, %p69
      %s72 = sadd.s32 %s71, 1
      %p75 = scmp.eq.s32.totalorder %s16, 1
      %p76 = scmp.ne.s32.totalorder %s71, %s73
      %p77 = scmp.eq.s32.totalorder %s16, 0
      %p78 = por %p76, %p77
      %p79 = scmp.ne.s32.totalorder %s71, %s73
      %p80 = scmp.eq.s32.totalorder %s21, 1
      %p81 = por %p79, %p80
      %p82 = scmp.ne.s32.totalorder %s73, %s74
      %p83 = scmp.eq.s32.totalorder %s21, 0
      %p84 = por %p82, %p83
      %p85 = scmp.ne.s32.totalorder %s73, %s74
      %p86 = scmp.eq.s32.totalorder %s22, 1
      %p87 = por %p85, %p86
      %p89 = scmp.ne.s32.totalorder %s74, %s88
      %p90 = scmp.eq.s32.totalorder %s22, 0
      %p91 = por %p89, %p90
      %s92 = ssub.s32 %s16, %s23
      %p93 = scmp.eq.s32.totalorder %s92, 0
      %s95 = sadd.s32 %s94, 1
      %s96 = scalar_select %p93, %s94, %s95
      %p99 = pneg %p93
      %p100 = scmp.eq.s32.totalorder %s16, 1
      %p101 = por %p99, %p100
      %p102 = scmp.ne.s32.totalorder %s94, %s97
      %p103 = scmp.eq.s32.totalorder %s16, 0
      %p104 = por %p102, %p103
      %p105 = scmp.ne.s32.totalorder %s94, %s97
      %p106 = scmp.eq.s32.totalorder %s21, 1
      %p107 = por %p105, %p106
      %p108 = scmp.ne.s32.totalorder %s97, %s98
      %p109 = scmp.eq.s32.totalorder %s21, 0
      %p110 = por %p108, %p109
      %p111 = scmp.ne.s32.totalorder %s97, %s98
      %p112 = scmp.eq.s32.totalorder %s22, 1
      %p113 = por %p111, %p112
      %p115 = scmp.ne.s32.totalorder %s98, %s114
      %p116 = scmp.eq.s32.totalorder %s22, 0
      %p117 = por %p115, %p116
      %p118 = scmp.le.s32.totalorder 1, %s16
      %p119 = scmp.lt.s32.totalorder %s16, 3
      %p120 = pnand %p118, %p119
      %p121 = pneg %p120
      // Predicated region
      $region9: #{tpu_custom_call.1} parent=5 // pred_check
        _
      $region10: #{tpu_custom_call.1} parent=5 // pred_check_branch
        %123 = sbr.rel (%p120) target = $region12
      $region11: #{tpu_custom_call.1} parent=5 // pred_region
        %s124 = ssub.s32 %s16, 1
        // Predicated region
        $region13: #{tpu_custom_call.1} parent=11 // pred_check
          %p125 = pneg %p63
        $region14: #{tpu_custom_call.1} parent=11 // pred_check_branch
          %127 = sbr.rel (%p125) target = $region16
        $region15: #{tpu_custom_call.1} parent=11 // pred_region
          %s129 = ssub.s32 2048, 2048
          %130 = vsyncadd [#allocation6], %s129
          %s131 = sshll.u32 [#allocation5], 4
          %s132 = int_to_ptr.vmem [resolvable:$true] %s131
          %137 = dma.hbm_to_vmem [thread:$0]  %s1, 2048, %s132, [#allocation6], 128, 128, 8
        $region16: #{tpu_custom_call.1} parent=11 // pred_fallthru
          _
        // Predicated region
        $region17: #{tpu_custom_call.1} parent=11 // pred_check
          %p138 = pneg %p84
        $region18: #{tpu_custom_call.1} parent=11 // pred_check_branch
          %140 = sbr.rel (%p138) target = $region20
        $region19: #{tpu_custom_call.1} parent=11 // pred_region
          %s142 = ssub.s32 128, 128
          %143 = vsyncadd [#allocation6], %s142
          %s145 = sshll.u32 [#allocation7], 4
          %s146 = int_to_ptr.vmem [resolvable:$true] %s145
          %148 = dma.hbm_to_vmem [thread:$0]  %s2, 128, %s146, [#allocation6]
        $region20: #{tpu_custom_call.1} parent=11 // pred_fallthru
          _
      $region12: #{tpu_custom_call.1} parent=5 // pred_fallthru
        _
      %p149 = scmp.lt.s32.totalorder %s16, 2
      // Predicated region
      $region21: #{tpu_custom_call.1} parent=5 // pred_check
        %p150 = pneg %p149
      $region22: #{tpu_custom_call.1} parent=5 // pred_check_branch
        %152 = sbr.rel (%p150) target = $region24
      $region23: #{tpu_custom_call.1} parent=5 // pred_region
        // Predicated region
        $region25: #{tpu_custom_call.1} parent=23 // pred_check
          %p153 = pneg %p36
        $region26: #{tpu_custom_call.1} parent=23 // pred_check_branch
          %155 = sbr.rel (%p153) target = $region28
        $region27: #{tpu_custom_call.1} parent=23 // pred_region
          %s156 = sand.u32 %s26, 1
          %s157 = scalar_lea.sflag [#allocation3], %s156
          %s158 = sand.u32 %s26, 1
          %s159 = smul.addr %s158, 8
          %s160 = scalar_lea.vmem [#allocation2], %s159
          %s162 = ssub.s32 128, 128
          %163 = vsyncadd %s157, %s162
          %s164 = smul.addr %s16, 128
          %s165 = scalar_lea.hbm %s0, %s164
          %s167 = sshll.u32 %s160, 4
          %s168 = int_to_ptr.vmem [resolvable:$true] %s167
          %170 = dma.hbm_to_vmem [thread:$0]  %s165, 128, %s168, %s157
        $region28: #{tpu_custom_call.1} parent=23 // pred_fallthru
          _
      $region24: #{tpu_custom_call.1} parent=5 // pred_fallthru
        _
      %p171 = scmp.le.s32.totalorder 1, %s16
      %p172 = scmp.lt.s32.totalorder %s16, 3
      %p173 = pnand %p171, %p172
      %p174 = pneg %p173
      // Predicated region
      $region29: #{tpu_custom_call.1} parent=5 // pred_check
        _
      $region30: #{tpu_custom_call.1} parent=5 // pred_check_branch
        %176 = sbr.rel (%p173) target = $region32
      $region31: #{tpu_custom_call.1} parent=5 // pred_region
        %s177 = ssub.s32 %s16, 1
        %s178 = sand.u32 %s29, 1
        %s179 = scalar_lea.sflag [#allocation3], %s178
        %s180 = sand.u32 %s29, 1
        %s181 = smul.addr %s180, 8
        %s182 = scalar_lea.vmem [#allocation2], %s181
        // Predicated region
        $region33: #{tpu_custom_call.1} parent=31 // pred_check
          %p183 = pneg %p42
        $region34: #{tpu_custom_call.1} parent=31 // pred_check_branch
          %185 = sbr.rel (%p183) target = $region36
        $region35: #{tpu_custom_call.1} parent=31 // pred_region
          %186 = dma.done %s179, 128
        $region36: #{tpu_custom_call.1} parent=31 // pred_fallthru
          _
        // Predicated region
        $region37: #{tpu_custom_call.1} parent=31 // pred_check
          %p187 = pneg %p63
        $region38: #{tpu_custom_call.1} parent=31 // pred_check_branch
          %189 = sbr.rel (%p187) target = $region40
        $region39: #{tpu_custom_call.1} parent=31 // pred_region
          %190 = dma.done [#allocation6], 2048
        $region40: #{tpu_custom_call.1} parent=31 // pred_fallthru
          _
        // Predicated region
        $region41: #{tpu_custom_call.1} parent=31 // pred_check
          %p191 = pneg %p84
        $region42: #{tpu_custom_call.1} parent=31 // pred_check_branch
          %193 = sbr.rel (%p191) target = $region44
        $region43: #{tpu_custom_call.1} parent=31 // pred_region
          %194 = dma.done [#allocation6], 128
        $region44: #{tpu_custom_call.1} parent=31 // pred_fallthru
          _
        %s195 = sand.u32 %s29, 1
        %s196 = scalar_lea.sflag [#allocation3], %s195
        %s197 = sand.u32 %s29, 1
        %s198 = smul.addr %s197, 8
        %s199 = scalar_lea.vmem [#allocation2], %s198
        %p200 = pneg %p42
        %p201 = pneg %p39
        %p202 = pneg %p63
        %p203 = pneg %p60
        %p204 = pneg %p84
        %p205 = pneg %p81
        %p206 = pneg %p110
        %p207 = pneg %p107
        %s208 = sand.u32 %s97, 1
        %s209 = scalar_lea.sflag [#allocation4], %s208
        %s210 = sand.u32 %s97, 1
        %s211 = smul.addr %s210, 8
        %s212 = scalar_lea.vmem [#allocation8], %s211
        %v213 = vld [vmem:[%s182] sm:$0xff]
        %v214 = vld [vmem:[#allocation5] sm:$0xff]
        %v215 = vld [vmem:[#allocation5 + $0x8] sm:$0xff]
        %v216 = vld [vmem:[#allocation5 + $0x10] sm:$0xff]
        %v217 = vld [vmem:[#allocation5 + $0x18] sm:$0xff]
        %v218 = vld [vmem:[#allocation5 + $0x20] sm:$0xff]
        %v219 = vld [vmem:[#allocation5 + $0x28] sm:$0xff]
        %v220 = vld [vmem:[#allocation5 + $0x30] sm:$0xff]
        %v221 = vld [vmem:[#allocation5 + $0x38] sm:$0xff]
        %v222 = vld [vmem:[#allocation5 + $0x40] sm:$0xff]
        %v223 = vld [vmem:[#allocation5 + $0x48] sm:$0xff]
        %v224 = vld [vmem:[#allocation5 + $0x50] sm:$0xff]
        %v225 = vld [vmem:[#allocation5 + $0x58] sm:$0xff]
        %v226 = vld [vmem:[#allocation5 + $0x60] sm:$0xff]
        %v227 = vld [vmem:[#allocation5 + $0x68] sm:$0xff]
        %v228 = vld [vmem:[#allocation5 + $0x70] sm:$0xff]
        %v229 = vld [vmem:[#allocation5 + $0x78] sm:$0xff]
        %v230 = vld [vmem:[#allocation7] sm:$0x1]
        %v231 = vlaneseq
        %v232 = vshrl.u32 %v231, 7
        %v233 = vsub.s32 0, %v232
        %v234 = vrot.slane %v230, %v233
        %235 = vmatprep.subr.mxu0 0.0
        %236 = vmatpush1.msra.mxu0 %v214
        %237 = vmatprep.subr.mxu0 0.0
        %238 = vmatpush1.msra.mxu0 %v215
        %239 = vmatprep.subr.mxu0 0.0
        %240 = vmatpush1.msra.mxu0 %v216
        %241 = vmatprep.subr.mxu0 0.0
        %242 = vmatpush1.msra.mxu0 %v217
        %243 = vmatprep.subr.mxu0 0.0
        %244 = vmatpush1.msra.mxu0 %v218
        %245 = vmatprep.subr.mxu0 0.0
        %246 = vmatpush1.msra.mxu0 %v219
        %247 = vmatprep.subr.mxu0 0.0
        %248 = vmatpush1.msra.mxu0 %v220
        %249 = vmatprep.subr.mxu0 0.0
        %250 = vmatpush1.msra.mxu0 %v221
        %251 = vmatprep.subr.mxu0 0.0
        %252 = vmatpush1.msra.mxu0 %v222
        %253 = vmatprep.subr.mxu0 0.0
        %254 = vmatpush1.msra.mxu0 %v223
        %255 = vmatprep.subr.mxu0 0.0
        %256 = vmatpush1.msra.mxu0 %v224
        %257 = vmatprep.subr.mxu0 0.0
        %258 = vmatpush1.msra.mxu0 %v225
        %259 = vmatprep.subr.mxu0 0.0
        %260 = vmatpush1.msra.mxu0 %v226
        %261 = vmatprep.subr.mxu0 0.0
        %262 = vmatpush1.msra.mxu0 %v227
        %263 = vmatprep.subr.mxu0 0.0
        %264 = vmatpush1.msra.mxu0 %v228
        %265 = vmatprep.subr.mxu0 0.0
        %266 = vmatpush1.msra.mxu0 %v229
        %267 = vmatprep.subr.mxu0 0.0
        %268 = vmatpush1.msra.mxu0 0.0
        %269 = vmatprep.subr.mxu0 0.0
        %270 = vmatpush1.msra.mxu0 0.0
        %271 = vmatprep.subr.mxu0 0.0
        %272 = vmatpush1.msra.mxu0 0.0
        %273 = vmatprep.subr.mxu0 0.0
        %274 = vmatpush1.msra.mxu0 0.0
        %275 = vmatprep.subr.mxu0 0.0
        %276 = vmatpush1.msra.mxu0 0.0
        %277 = vmatprep.subr.mxu0 0.0
        %278 = vmatpush1.msra.mxu0 0.0
        %279 = vmatprep.subr.mxu0 0.0
        %280 = vmatpush1.msra.mxu0 0.0
        %281 = vmatprep.subr.mxu0 0.0
        %282 = vmatpush1.msra.mxu0 0.0
        %283 = vmatprep.subr.mxu0 0.0
        %284 = vmatpush1.msra.mxu0 0.0
        %285 = vmatprep.subr.mxu0 0.0
        %286 = vmatpush1.msra.mxu0 0.0
        %287 = vmatprep.subr.mxu0 0.0
        %288 = vmatpush1.msra.mxu0 0.0
        %289 = vmatprep.subr.mxu0 0.0
        %290 = vmatpush1.msra.mxu0 0.0
        %291 = vmatprep.subr.mxu0 0.0
        %292 = vmatpush1.msra.mxu0 0.0
        %293 = vmatprep.subr.mxu0 0.0
        %294 = vmatpush1.msra.mxu0 0.0
        %295 = vmatprep.subr.mxu0 0.0
        %296 = vmatpush1.msra.mxu0 0.0
        %297 = vmatprep.subr.mxu0 0.0
        %298 = vmatpush1.msra.mxu0 0.0
        %299 = vmatprep.mubr.f32.mxu0 0.0
        %300 = vmatmul.mubr.f32.gmra.mrb[0].mxu0 %v213
        %v301 = vpop.f32.mrb[0].mxu0
        %v302 = vadd.f32 %v234, %v301
        %v303 = vpop.f32.mrb[0].mxu0
        %304 = vdwg.mxu0
        %v305 = vmax.f32 %v302, 0.0
        %306 = vadd.xlane.f32.xlu0 %v305
        %v307 = vpop.xlane.xlu0 %306
        %v308 = vrcp.pop 128.0
        %v309 = vmul.f32 %v307, %v308
        %v310 = vsub.f32 %v305, %v309
        %v311 = vmul.f32 %v310, %v310
        %312 = vadd.xlane.f32.xlu0 %v311
        %v313 = vpop.xlane.xlu0 %312
        %v314 = vmul.f32 %v313, %v308
        %v315 = vadd.f32 %v314, 1e-12
        %v316 = vrsqrt.pop %v315
        %v317 = vmul.f32 %v310, %v316
        %v318 = vld [vmem:[#allocation7 + $0x1] sm:$0x1]
        %v319 = vlaneseq
        %v320 = vshrl.u32 %v319, 7
        %v321 = vsub.s32 0, %v320
        %v322 = vrot.slane %v318, %v321
        %v323 = vmul.f32 %v317, %v322
        %v324 = vld [vmem:[#allocation7 + $0x2] sm:$0x1]
        %v325 = vlaneseq
        %v326 = vshrl.u32 %v325, 7
        %v327 = vsub.s32 0, %v326
        %v328 = vrot.slane %v324, %v327
        %v329 = vadd.f32 %v323, %v328
        %330 = vst [vmem:[%s212] sm:$0xff] %v329
        %s331 = sand.u32 %s97, 1
        %s332 = scalar_lea.sflag [#allocation4], %s331
        %s333 = sand.u32 %s97, 1
        %s334 = smul.addr %s333, 8
        %s335 = scalar_lea.vmem [#allocation8], %s334
        // Predicated region
        $region45: #{tpu_custom_call.1} parent=31 // pred_check
          %p336 = pneg %p107
        $region46: #{tpu_custom_call.1} parent=31 // pred_check_branch
          %338 = sbr.rel (%p336) target = $region48
        $region47: #{tpu_custom_call.1} parent=31 // pred_region
          %s340 = ssub.s32 128, 128
          %341 = vsyncadd %s332, %s340
          %s342 = smul.addr %s21, 128
          %s343 = scalar_lea.hbm %s3, %s342
          %s345 = sshll.u32 %s335, 4
          %s346 = int_to_ptr.vmem [resolvable:$true] %s345
          %348 = dma.vmem_to_hbm [thread:$0]  %s346, 128, %s343, %s332
        $region48: #{tpu_custom_call.1} parent=31 // pred_fallthru
          _
      $region32: #{tpu_custom_call.1} parent=5 // pred_fallthru
        _
      %p349 = scmp.le.s32.totalorder 2, %s16
      // Predicated region
      $region49: #{tpu_custom_call.1} parent=5 // pred_check
        %p350 = pneg %p349
      $region50: #{tpu_custom_call.1} parent=5 // pred_check_branch
        %352 = sbr.rel (%p350) target = $region52
      $region51: #{tpu_custom_call.1} parent=5 // pred_region
        %s353 = ssub.s32 %s16, 2
        // Predicated region
        $region53: #{tpu_custom_call.1} parent=51 // pred_check
          %p354 = pneg %p113
        $region54: #{tpu_custom_call.1} parent=51 // pred_check_branch
          %356 = sbr.rel (%p354) target = $region56
        $region55: #{tpu_custom_call.1} parent=51 // pred_region
          %s357 = sand.u32 %s98, 1
          %s358 = scalar_lea.sflag [#allocation4], %s357
          %s359 = sand.u32 %s98, 1
          %s360 = smul.addr %s359, 8
          %s361 = scalar_lea.vmem [#allocation8], %s360
          %362 = dma.done %s358, 128
        $region56: #{tpu_custom_call.1} parent=51 // pred_fallthru
          _
      $region52: #{tpu_custom_call.1} parent=5 // pred_fallthru
        _
    $region6: #{tpu_custom_call.1} parent=1 // loop_footer
      %s20 = sadd.s32 1, %s16
    $region7: #{tpu_custom_call.1} parent=1 // loop_footer_branch
      %15 = sbr.rel target = $region3
    $region8: #{tpu_custom_call.1} parent=1 // loop_exit
      _
    %363 = vsyncpa [#allocation3], 1
    %s364 = scalar_lea.sflag [#allocation3], 1
    %365 = vsyncpa %s364, 1
    %366 = vsyncpa [#allocation6], 1
    %367 = vsyncpa [#allocation4], 1
    %s368 = scalar_lea.sflag [#allocation4], 1
    %369 = vsyncpa %s368, 1

</llo_original>
